<compile_context>
chip_gen: v6e
topology: v6e:2x2x1
jax: 0.10.0
libtpu: 0.0.40
codegen_flags: <defaults>
</compile_context>

<pallas_src>
import functools

import jax
import jax.numpy as jnp
from jax.experimental import pallas as pl
from jax.experimental.pallas import tpu as pltpu


def _mul_conv1x1_kernel(scale_ref, w_ref, x_ref, o_ref):
    # scale_ref: (1, Cin)     per-channel scale (the x51 broadcast multiply)
    # w_ref:     (Cout, Cin)  1x1 conv weight
    # x_ref:     (Cin, HW)    feature map, channels-major (free reshape of NCHW)
    # o_ref:     (Cout, HW)
    ws = w_ref[...] * scale_ref[...]             # fold scale into weight (sublane bcast)
    o_ref[...] = jnp.dot(
        ws, x_ref[...], preferred_element_type=jnp.float32
    ).astype(o_ref.dtype)                        # MXU matmul, lane-dense 784-wide output


@functools.partial(jax.jit, static_argnames=())
def mul_conv2d_1x1(x51, x46, weight):
    """x51: (1, Cin, 1, 1), x46: (1, Cin, H, W), weight: (Cout, Cin, 1, 1) -> (1, Cout, H, W)."""
    N, Cin, H, W = x46.shape
    assert N == 1, "module fixes batch=1 (x51 broadcast scale)"
    Cout = weight.shape[0]
    HW = H * W

    # Free reshapes (contiguous, no transpose / data movement):
    x_mat = x46.reshape(Cin, HW)          # (Cin, HW)
    scale = x51.reshape(1, Cin)           # (1, Cin)
    w_mat = weight.reshape(Cout, Cin)     # (Cout, Cin)

    flops = 2 * Cout * Cin * HW + Cout * Cin
    bytes_accessed = 4 * (Cin * HW + Cout * Cin + Cin + Cout * HW)

    out_mat = pl.pallas_call(
        _mul_conv1x1_kernel,
        out_shape=jax.ShapeDtypeStruct((Cout, HW), x46.dtype),
        in_specs=[
            pl.BlockSpec(memory_space=pltpu.MemorySpace.VMEM),
            pl.BlockSpec(memory_space=pltpu.MemorySpace.VMEM),
            pl.BlockSpec(memory_space=pltpu.MemorySpace.VMEM),
        ],
        out_specs=pl.BlockSpec(memory_space=pltpu.MemorySpace.VMEM),
        cost_estimate=pl.CostEstimate(
            flops=flops, transcendentals=0, bytes_accessed=bytes_accessed
        ),
    )(scale, w_mat, x_mat)

    # Free reshape back to NCHW.
    return out_mat.reshape(N, Cout, H, W)


if __name__ == "__main__":
    key = jax.random.PRNGKey(0)
    k1, k2, k3 = jax.random.split(key, 3)

    # Shapes implied by the module: x46 (1,120,28,28), x51 (1,120,1,1), Conv2d(120->40, 1x1)
    N, Cin, H, W, Cout = 1, 120, 28, 28, 40
    x46 = jax.random.normal(k1, (N, Cin, H, W), dtype=jnp.float32)
    x51 = jax.random.normal(k2, (N, Cin, 1, 1), dtype=jnp.float32)
    weight = jax.random.normal(k3, (Cout, Cin, 1, 1), dtype=jnp.float32) * 0.05

    out = mul_conv2d_1x1(x51, x46, weight)
    jax.block_until_ready(out)

    # reference check in plain JAX (x52 = x51*x46; x53 = conv1x1(x52))
    x52 = x51 * x46
    ref = jax.lax.conv_general_dilated(
        x52, weight, window_strides=(1, 1), padding="VALID",
        dimension_numbers=("NCHW", "OIHW", "NCHW"),
    )
    assert out.shape == (N, Cout, H, W)
    assert jnp.allclose(out, ref, atol=1e-4, rtol=1e-4)

    print("KERNEL_OK")
</pallas_src>

<mosaic_0001>
module attributes {stable_mosaic.version = 11 : i64} {
  func.func @_mul_conv1x1_kernel(%arg0: memref<1x120xf32, #tpu.memory_space<vmem>>, %arg1: memref<40x120xf32, #tpu.memory_space<vmem>>, %arg2: memref<120x784xf32, #tpu.memory_space<vmem>>, %arg3: memref<40x784xf32, #tpu.memory_space<vmem>>) attributes {dimension_semantics = [], scalar_prefetch = 0 : i64, scratch_operands = 0 : i64, tpu.core_type = #tpu.core_type<tc>} {
    %c0 = arith.constant 0 : index
    %c0_0 = arith.constant 0 : index
    %0 = vector.load %arg1[%c0, %c0_0] : memref<40x120xf32, #tpu.memory_space<vmem>>, vector<40x120xf32>
    %c0_1 = arith.constant 0 : index
    %c0_2 = arith.constant 0 : index
    %1 = vector.load %arg0[%c0_1, %c0_2] : memref<1x120xf32, #tpu.memory_space<vmem>>, vector<1x120xf32>
    %2 = vector.broadcast %1 : vector<1x120xf32> to vector<40x120xf32>
    %3 = arith.mulf %0, %2 : vector<40x120xf32>
    %c0_3 = arith.constant 0 : index
    %c0_4 = arith.constant 0 : index
    %4 = vector.load %arg2[%c0_3, %c0_4] : memref<120x784xf32, #tpu.memory_space<vmem>>, vector<120x784xf32>
    %cst = arith.constant dense<0.000000e+00> : vector<40x784xf32>
    %5 = tpu.matmul %3, %4, %cst {dimension_numbers = #tpu.dot_dimension_numbers<[1], [0], [0], [1], [0, 0, 1, 1], [], []>} : vector<40x120xf32>, vector<120x784xf32>, vector<40x784xf32> -> vector<40x784xf32>
    %c0_5 = arith.constant 0 : index
    %c0_6 = arith.constant 0 : index
    %6 = vector.load %arg3[%c0_5, %c0_6] : memref<40x784xf32, #tpu.memory_space<vmem>>, vector<40x784xf32>
    tpu.vector_store %arg3[%c0_5, %c0_6], %5 {strides = array<i32>} : memref<40x784xf32, #tpu.memory_space<vmem>>, vector<40x784xf32>,
    return
  }
}

</mosaic_0001>

<llo_original>
// kernel: mul_conv2d_1x1.1
$region0: #{mul_conv2d_1x1.1}
  #allocation0 [shape = 'u32[]', space=smem, size = 0x4, offset = 0x4, fixed_abs, tag = 'smem constant byte address 0x4 - core index']
  #allocation1 [shape = 'u32[144,128]{1,0:T(1,128)}', space=vmem, size = 0x12000, scoped, tag = 'internal scratch']
  %s0 = inlined_call_operand.vmem [shape: f32[1,120], index: 0, kind: input, shape index: {}]
  %s1 = inlined_call_operand.vmem [shape: f32[40,120], index: 1, kind: input, shape index: {}]
  %s2 = inlined_call_operand.vmem [shape: f32[120,784], index: 2, kind: input, shape index: {}]
  %s3 = inlined_call_operand.vmem [shape: f32[40,784], index: 3, kind: output, shape index: {}]
  %s4 = sld [smem:[#allocation0]]
  $region22: #{mul_conv2d_1x1.1} parent=0
    _
  %s6 = ssub.s32 1, %s4
  %s7 = scalar_select 0, %s6, %s4
  // Predicated region
  $region2: #{mul_conv2d_1x1.1} parent=0 // pred_check
    _
  $region3: #{mul_conv2d_1x1.1} parent=0 // pred_check_branch
    %9 = sbr.rel (0) target = $region5
  $region4: #{mul_conv2d_1x1.1} parent=0 // pred_region
    _
  $region5: #{mul_conv2d_1x1.1} parent=0 // pred_fallthru
    _
  // Predicated region
  $region6: #{mul_conv2d_1x1.1} parent=0 // pred_check
    _
  $region7: #{mul_conv2d_1x1.1} parent=0 // pred_check_branch
    %11 = sbr.rel (0) target = $region9
  $region8: #{mul_conv2d_1x1.1} parent=0 // pred_region
    _
  $region9: #{mul_conv2d_1x1.1} parent=0 // pred_fallthru
    _
  // Predicated region
  $region10: #{mul_conv2d_1x1.1} parent=0 // pred_check
    _
  $region11: #{mul_conv2d_1x1.1} parent=0 // pred_check_branch
    %13 = sbr.rel (0) target = $region13
  $region12: #{mul_conv2d_1x1.1} parent=0 // pred_region
    _
  $region13: #{mul_conv2d_1x1.1} parent=0 // pred_fallthru
    _
  %v14 = vld [vmem:[%s1] sm:$0xff]
  %v15 = vld [vmem:[%s1 + $0x8] sm:$0xff]
  %v16 = vld [vmem:[%s1 + $0x10] sm:$0xff]
  %v17 = vld [vmem:[%s1 + $0x18] sm:$0xff]
  %v18 = vld [vmem:[%s1 + $0x20] sm:$0xff]
  %v19 = vld [vmem:[%s0] sm:$0x1]
  %v21 = vlaneseq
  %v22 = vshrl.u32 %v21, 7
  %v23 = vsub.s32 0, %v22
  %v24 = vrot.slane %v19, %v23
  %v26 = vmul.f32 %v14, %v24
  %v27 = vmul.f32 %v15, %v24
  %v28 = vmul.f32 %v16, %v24
  %v29 = vmul.f32 %v17, %v24
  %v30 = vmul.f32 %v18, %v24
  %v31 = vld [vmem:[%s2] sm:$0xff]
  %v32 = vld [vmem:[%s2 + $0x8] sm:$0xff]
  %v33 = vld [vmem:[%s2 + $0x10] sm:$0xff]
  %v34 = vld [vmem:[%s2 + $0x18] sm:$0xff]
  %v35 = vld [vmem:[%s2 + $0x20] sm:$0xff]
  %v36 = vld [vmem:[%s2 + $0x28] sm:$0xff]
  %v37 = vld [vmem:[%s2 + $0x30] sm:$0xff]
  %v38 = vld [vmem:[%s2 + $0x38] sm:$0xff]
  %v39 = vld [vmem:[%s2 + $0x40] sm:$0xff]
  %v40 = vld [vmem:[%s2 + $0x48] sm:$0xff]
  %v41 = vld [vmem:[%s2 + $0x50] sm:$0xff]
  %v42 = vld [vmem:[%s2 + $0x58] sm:$0xff]
  %v43 = vld [vmem:[%s2 + $0x60] sm:$0xff]
  %v44 = vld [vmem:[%s2 + $0x68] sm:$0xff]
  %v45 = vld [vmem:[%s2 + $0x70] sm:$0xff]
  %v46 = vld [vmem:[%s2 + $0x78] sm:$0xff]
  %v47 = vld [vmem:[%s2 + $0x80] sm:$0xff]
  %v48 = vld [vmem:[%s2 + $0x88] sm:$0xff]
  %v49 = vld [vmem:[%s2 + $0x90] sm:$0xff]
  %v50 = vld [vmem:[%s2 + $0x98] sm:$0xff]
  %v51 = vld [vmem:[%s2 + $0xa0] sm:$0xff]
  %v52 = vld [vmem:[%s2 + $0xa8] sm:$0xff]
  %v53 = vld [vmem:[%s2 + $0xb0] sm:$0xff]
  %v54 = vld [vmem:[%s2 + $0xb8] sm:$0xff]
  %v55 = vld [vmem:[%s2 + $0xc0] sm:$0xff]
  %v56 = vld [vmem:[%s2 + $0xc8] sm:$0xff]
  %v57 = vld [vmem:[%s2 + $0xd0] sm:$0xff]
  %v58 = vld [vmem:[%s2 + $0xd8] sm:$0xff]
  %v59 = vld [vmem:[%s2 + $0xe0] sm:$0xff]
  %v60 = vld [vmem:[%s2 + $0xe8] sm:$0xff]
  %v61 = vld [vmem:[%s2 + $0xf0] sm:$0xff]
  %v62 = vld [vmem:[%s2 + $0xf8] sm:$0xff]
  %v63 = vld [vmem:[%s2 + $0x100] sm:$0xff]
  %v64 = vld [vmem:[%s2 + $0x108] sm:$0xff]
  %v65 = vld [vmem:[%s2 + $0x110] sm:$0xff]
  %v66 = vld [vmem:[%s2 + $0x118] sm:$0xff]
  %v67 = vld [vmem:[%s2 + $0x120] sm:$0xff]
  %v68 = vld [vmem:[%s2 + $0x128] sm:$0xff]
  %v69 = vld [vmem:[%s2 + $0x130] sm:$0xff]
  %v70 = vld [vmem:[%s2 + $0x138] sm:$0xff]
  %v71 = vld [vmem:[%s2 + $0x140] sm:$0xff]
  %v72 = vld [vmem:[%s2 + $0x148] sm:$0xff]
  %v73 = vld [vmem:[%s2 + $0x150] sm:$0xff]
  %v74 = vld [vmem:[%s2 + $0x158] sm:$0xff]
  %v75 = vld [vmem:[%s2 + $0x160] sm:$0xff]
  %v76 = vld [vmem:[%s2 + $0x168] sm:$0xff]
  %v77 = vld [vmem:[%s2 + $0x170] sm:$0xff]
  %v78 = vld [vmem:[%s2 + $0x178] sm:$0xff]
  %v79 = vld [vmem:[%s2 + $0x180] sm:$0xff]
  %v80 = vld [vmem:[%s2 + $0x188] sm:$0xff]
  %v81 = vld [vmem:[%s2 + $0x190] sm:$0xff]
  %v82 = vld [vmem:[%s2 + $0x198] sm:$0xff]
  %v83 = vld [vmem:[%s2 + $0x1a0] sm:$0xff]
  %v84 = vld [vmem:[%s2 + $0x1a8] sm:$0xff]
  %v85 = vld [vmem:[%s2 + $0x1b0] sm:$0xff]
  %v86 = vld [vmem:[%s2 + $0x1b8] sm:$0xff]
  %v87 = vld [vmem:[%s2 + $0x1c0] sm:$0xff]
  %v88 = vld [vmem:[%s2 + $0x1c8] sm:$0xff]
  %v89 = vld [vmem:[%s2 + $0x1d0] sm:$0xff]
  %v90 = vld [vmem:[%s2 + $0x1d8] sm:$0xff]
  %v91 = vld [vmem:[%s2 + $0x1e0] sm:$0xff]
  %v92 = vld [vmem:[%s2 + $0x1e8] sm:$0xff]
  %v93 = vld [vmem:[%s2 + $0x1f0] sm:$0xff]
  %v94 = vld [vmem:[%s2 + $0x1f8] sm:$0xff]
  %v95 = vld [vmem:[%s2 + $0x200] sm:$0xff]
  %v96 = vld [vmem:[%s2 + $0x208] sm:$0xff]
  %v97 = vld [vmem:[%s2 + $0x210] sm:$0xff]
  %v98 = vld [vmem:[%s2 + $0x218] sm:$0xff]
  %v99 = vld [vmem:[%s2 + $0x220] sm:$0xff]
  %v100 = vld [vmem:[%s2 + $0x228] sm:$0xff]
  %v101 = vld [vmem:[%s2 + $0x230] sm:$0xff]
  %v102 = vld [vmem:[%s2 + $0x238] sm:$0xff]
  %v103 = vld [vmem:[%s2 + $0x240] sm:$0xff]
  %v104 = vld [vmem:[%s2 + $0x248] sm:$0xff]
  %v105 = vld [vmem:[%s2 + $0x250] sm:$0xff]
  %v106 = vld [vmem:[%s2 + $0x258] sm:$0xff]
  %v107 = vld [vmem:[%s2 + $0x260] sm:$0xff]
  %v108 = vld [vmem:[%s2 + $0x268] sm:$0xff]
  %v109 = vld [vmem:[%s2 + $0x270] sm:$0xff]
  %v110 = vld [vmem:[%s2 + $0x278] sm:$0xff]
  %v111 = vld [vmem:[%s2 + $0x280] sm:$0xff]
  %v112 = vld [vmem:[%s2 + $0x288] sm:$0xff]
  %v113 = vld [vmem:[%s2 + $0x290] sm:$0xff]
  %v114 = vld [vmem:[%s2 + $0x298] sm:$0xff]
  %v115 = vld [vmem:[%s2 + $0x2a0] sm:$0xff]
  %v116 = vld [vmem:[%s2 + $0x2a8] sm:$0xff]
  %v117 = vld [vmem:[%s2 + $0x2b0] sm:$0xff]
  %v118 = vld [vmem:[%s2 + $0x2b8] sm:$0xff]
  %v119 = vld [vmem:[%s2 + $0x2c0] sm:$0xff]
  %v120 = vld [vmem:[%s2 + $0x2c8] sm:$0xff]
  %v121 = vld [vmem:[%s2 + $0x2d0] sm:$0xff]
  %v122 = vld [vmem:[%s2 + $0x2d8] sm:$0xff]
  %v123 = vld [vmem:[%s2 + $0x2e0] sm:$0xff]
  %v124 = vld [vmem:[%s2 + $0x2e8] sm:$0xff]
  %v125 = vld [vmem:[%s2 + $0x2f0] sm:$0xff]
  %v126 = vld [vmem:[%s2 + $0x2f8] sm:$0xff]
  %v127 = vld [vmem:[%s2 + $0x300] sm:$0xff]
  %v128 = vld [vmem:[%s2 + $0x308] sm:$0xff]
  %v129 = vld [vmem:[%s2 + $0x310] sm:$0xff]
  %v130 = vld [vmem:[%s2 + $0x318] sm:$0xff]
  %v131 = vld [vmem:[%s2 + $0x320] sm:$0xff]
  %v132 = vld [vmem:[%s2 + $0x328] sm:$0xff]
  %v133 = vld [vmem:[%s2 + $0x330] sm:$0xff]
  %v134 = vld [vmem:[%s2 + $0x338] sm:$0xff]
  %v135 = vld [vmem:[%s2 + $0x340] sm:$0xff]
  %vm136 = vcmask 982016
  %v138 = vsel %vm136, %v26, 0
  %v141 = vsel %vm136, %v27, 0
  %v144 = vsel %vm136, %v28, 0
  %v147 = vsel %vm136, %v29, 0
  %v150 = vsel %vm136, %v30, 0
  %152 = vmatprep.subr.mxu0 0.0
  %153 = vmatpush1.msra.mxu0 0.0
  %154 = vmatprep.subr.mxu0 %v130
  %155 = vmatpush1.msra.mxu0 %v129
  %156 = vmatprep.subr.mxu0 %v123
  %157 = vmatpush1.msra.mxu0 %v122
  %158 = vmatprep.subr.mxu0 %v116
  %159 = vmatpush1.msra.mxu0 %v115
  %160 = vmatprep.subr.mxu0 %v109
  %161 = vmatpush1.msra.mxu0 %v108
  %162 = vmatprep.subr.mxu0 %v102
  %163 = vmatpush1.msra.mxu0 %v101
  %164 = vmatprep.subr.mxu0 %v95
  %165 = vmatpush1.msra.mxu0 %v94
  %166 = vmatprep.subr.mxu0 %v88
  %167 = vmatpush1.msra.mxu0 %v87
  %168 = vmatprep.subr.mxu0 %v81
  %169 = vmatpush1.msra.mxu0 %v80
  %170 = vmatprep.subr.mxu0 %v74
  %171 = vmatpush1.msra.mxu0 %v73
  %172 = vmatprep.subr.mxu0 %v67
  %173 = vmatpush1.msra.mxu0 %v66
  %174 = vmatprep.subr.mxu0 %v60
  %175 = vmatpush1.msra.mxu0 %v59
  %176 = vmatprep.subr.mxu0 %v53
  %177 = vmatpush1.msra.mxu0 %v52
  %178 = vmatprep.subr.mxu0 %v46
  %179 = vmatpush1.msra.mxu0 %v45
  %180 = vmatprep.subr.mxu0 %v39
  %181 = vmatpush1.msra.mxu0 %v38
  %182 = vmatprep.subr.mxu0 %v32
  %183 = vmatpush1.msra.mxu0 %v31
  %184 = vmatprep.subr.mxu0 0.0
  %185 = vmatpush2.msra.mxu0 0.0
  %186 = vmatprep.subr.mxu0 0.0
  %187 = vmatpush2.msra.mxu0 0.0
  %188 = vmatprep.subr.mxu0 0.0
  %189 = vmatpush2.msra.mxu0 0.0
  %190 = vmatprep.subr.mxu0 0.0
  %191 = vmatpush2.msra.mxu0 0.0
  %192 = vmatprep.subr.mxu0 0.0
  %193 = vmatpush2.msra.mxu0 0.0
  %194 = vmatprep.subr.mxu0 0.0
  %195 = vmatpush2.msra.mxu0 0.0
  %196 = vmatprep.subr.mxu0 0.0
  %197 = vmatpush2.msra.mxu0 0.0
  %198 = vmatprep.subr.mxu0 0.0
  %199 = vmatpush2.msra.mxu0 0.0
  %200 = vmatprep.subr.mxu0 0.0
  %201 = vmatpush2.msra.mxu0 0.0
  %202 = vmatprep.subr.mxu0 0.0
  %203 = vmatpush2.msra.mxu0 0.0
  %204 = vmatprep.subr.mxu0 0.0
  %205 = vmatpush2.msra.mxu0 0.0
  %206 = vmatprep.subr.mxu0 0.0
  %207 = vmatpush2.msra.mxu0 0.0
  %208 = vmatprep.subr.mxu0 0.0
  %209 = vmatpush2.msra.mxu0 0.0
  %210 = vmatprep.subr.mxu0 0.0
  %211 = vmatpush2.msra.mxu0 0.0
  %212 = vmatprep.subr.mxu0 0.0
  %213 = vmatpush2.msra.mxu0 0.0
  %214 = vmatprep.subr.mxu0 0.0
  %215 = vmatpush2.msra.mxu0 0.0
  %216 = vmatprep.mubr.f32.mxu0 0.0
  %217 = vmatmul.mubr.f32.gmra.mxu0 %v138
  %v218 = vpop.f32.mrf.mxu0
  %v219 = vadd.f32 0.0, %v218
  %v220 = vpop.f32.mrf.mxu0
  %v221 = vadd.f32 0.0, %v220
  %222 = vmatprep.mubr.f32.mxu0 0.0
  %223 = vmatmul.mubr.f32.gmra.mxu0 %v141
  %v224 = vpop.f32.mrf.mxu0
  %v225 = vadd.f32 0.0, %v224
  %v226 = vpop.f32.mrf.mxu0
  %v227 = vadd.f32 0.0, %v226
  %228 = vmatprep.mubr.f32.mxu0 0.0
  %229 = vmatmul.mubr.f32.gmra.mxu0 %v144
  %v230 = vpop.f32.mrf.mxu0
  %v231 = vadd.f32 0.0, %v230
  %v232 = vpop.f32.mrf.mxu0
  %v233 = vadd.f32 0.0, %v232
  %234 = vmatprep.mubr.f32.mxu0 0.0
  %235 = vmatmul.mubr.f32.gmra.mxu0 %v147
  %v236 = vpop.f32.mrf.mxu0
  %v237 = vadd.f32 0.0, %v236
  %v238 = vpop.f32.mrf.mxu0
  %v239 = vadd.f32 0.0, %v238
  %240 = vmatprep.mubr.f32.mxu0 0.0
  %241 = vmatmul.mubr.f32.gmra.mxu0 %v150
  %v242 = vpop.f32.mrf.mxu0
  %v243 = vadd.f32 0.0, %v242
  %v244 = vpop.f32.mrf.mxu0
  %v245 = vadd.f32 0.0, %v244
  %246 = vdwg.mxu0
  %247 = vmatprep.subr.mxu0 0.0
  %248 = vmatpush1.msra.mxu0 0.0
  %249 = vmatprep.subr.mxu0 %v132
  %250 = vmatpush1.msra.mxu0 %v131
  %251 = vmatprep.subr.mxu0 %v125
  %252 = vmatpush1.msra.mxu0 %v124
  %253 = vmatprep.subr.mxu0 %v118
  %254 = vmatpush1.msra.mxu0 %v117
  %255 = vmatprep.subr.mxu0 %v111
  %256 = vmatpush1.msra.mxu0 %v110
  %257 = vmatprep.subr.mxu0 %v104
  %258 = vmatpush1.msra.mxu0 %v103
  %259 = vmatprep.subr.mxu0 %v97
  %260 = vmatpush1.msra.mxu0 %v96
  %261 = vmatprep.subr.mxu0 %v90
  %262 = vmatpush1.msra.mxu0 %v89
  %263 = vmatprep.subr.mxu0 %v83
  %264 = vmatpush1.msra.mxu0 %v82
  %265 = vmatprep.subr.mxu0 %v76
  %266 = vmatpush1.msra.mxu0 %v75
  %267 = vmatprep.subr.mxu0 %v69
  %268 = vmatpush1.msra.mxu0 %v68
  %269 = vmatprep.subr.mxu0 %v62
  %270 = vmatpush1.msra.mxu0 %v61
  %271 = vmatprep.subr.mxu0 %v55
  %272 = vmatpush1.msra.mxu0 %v54
  %273 = vmatprep.subr.mxu0 %v48
  %274 = vmatpush1.msra.mxu0 %v47
  %275 = vmatprep.subr.mxu0 %v41
  %276 = vmatpush1.msra.mxu0 %v40
  %277 = vmatprep.subr.mxu0 %v34
  %278 = vmatpush1.msra.mxu0 %v33
  %279 = vmatprep.subr.mxu0 0.0
  %280 = vmatpush2.msra.mxu0 0.0
  %281 = vmatprep.subr.mxu0 0.0
  %282 = vmatpush2.msra.mxu0 0.0
  %283 = vmatprep.subr.mxu0 0.0
  %284 = vmatpush2.msra.mxu0 0.0
  %285 = vmatprep.subr.mxu0 0.0
  %286 = vmatpush2.msra.mxu0 0.0
  %287 = vmatprep.subr.mxu0 0.0
  %288 = vmatpush2.msra.mxu0 0.0
  %289 = vmatprep.subr.mxu0 0.0
  %290 = vmatpush2.msra.mxu0 0.0
  %291 = vmatprep.subr.mxu0 0.0
  %292 = vmatpush2.msra.mxu0 0.0
  %293 = vmatprep.subr.mxu0 0.0
  %294 = vmatpush2.msra.mxu0 0.0
  %295 = vmatprep.subr.mxu0 0.0
  %296 = vmatpush2.msra.mxu0 0.0
  %297 = vmatprep.subr.mxu0 0.0
  %298 = vmatpush2.msra.mxu0 0.0
  %299 = vmatprep.subr.mxu0 0.0
  %300 = vmatpush2.msra.mxu0 0.0
  %301 = vmatprep.subr.mxu0 0.0
  %302 = vmatpush2.msra.mxu0 0.0
  %303 = vmatprep.subr.mxu0 0.0
  %304 = vmatpush2.msra.mxu0 0.0
  %305 = vmatprep.subr.mxu0 0.0
  %306 = vmatpush2.msra.mxu0 0.0
  %307 = vmatprep.subr.mxu0 0.0
  %308 = vmatpush2.msra.mxu0 0.0
  %309 = vmatprep.subr.mxu0 0.0
  %310 = vmatpush2.msra.mxu0 0.0
  %311 = vmatprep.mubr.f32.mxu0 0.0
  %312 = vmatmul.mubr.f32.gmra.mxu0 %v138
  %v313 = vpop.f32.mrf.mxu0
  %v314 = vadd.f32 0.0, %v313
  %v315 = vpop.f32.mrf.mxu0
  %v316 = vadd.f32 0.0, %v315
  %317 = vmatprep.mubr.f32.mxu0 0.0
  %318 = vmatmul.mubr.f32.gmra.mxu0 %v141
  %v319 = vpop.f32.mrf.mxu0
  %v320 = vadd.f32 0.0, %v319
  %v321 = vpop.f32.mrf.mxu0
  %v322 = vadd.f32 0.0, %v321
  %323 = vmatprep.mubr.f32.mxu0 0.0
  %324 = vmatmul.mubr.f32.gmra.mxu0 %v144
  %v325 = vpop.f32.mrf.mxu0
  %v326 = vadd.f32 0.0, %v325
  %v327 = vpop.f32.mrf.mxu0
  %v328 = vadd.f32 0.0, %v327
  %329 = vmatprep.mubr.f32.mxu0 0.0
  %330 = vmatmul.mubr.f32.gmra.mxu0 %v147
  %v331 = vpop.f32.mrf.mxu0
  %v332 = vadd.f32 0.0, %v331
  %v333 = vpop.f32.mrf.mxu0
  %v334 = vadd.f32 0.0, %v333
  %335 = vmatprep.mubr.f32.mxu0 0.0
  %336 = vmatmul.mubr.f32.gmra.mxu0 %v150
  %v337 = vpop.f32.mrf.mxu0
  %v338 = vadd.f32 0.0, %v337
  %v339 = vpop.f32.mrf.mxu0
  %v340 = vadd.f32 0.0, %v339
  %341 = vdwg.mxu0
  %342 = vmatprep.subr.mxu0 0.0
  %343 = vmatpush1.msra.mxu0 0.0
  %344 = vmatprep.subr.mxu0 %v134
  %345 = vmatpush1.msra.mxu0 %v133
  %346 = vmatprep.subr.mxu0 %v127
  %347 = vmatpush1.msra.mxu0 %v126
  %348 = vmatprep.subr.mxu0 %v120
  %349 = vmatpush1.msra.mxu0 %v119
  %350 = vmatprep.subr.mxu0 %v113
  %351 = vmatpush1.msra.mxu0 %v112
  %352 = vmatprep.subr.mxu0 %v106
  %353 = vmatpush1.msra.mxu0 %v105
  %354 = vmatprep.subr.mxu0 %v99
  %355 = vmatpush1.msra.mxu0 %v98
  %356 = vmatprep.subr.mxu0 %v92
  %357 = vmatpush1.msra.mxu0 %v91
  %358 = vmatprep.subr.mxu0 %v85
  %359 = vmatpush1.msra.mxu0 %v84
  %360 = vmatprep.subr.mxu0 %v78
  %361 = vmatpush1.msra.mxu0 %v77
  %362 = vmatprep.subr.mxu0 %v71
  %363 = vmatpush1.msra.mxu0 %v70
  %364 = vmatprep.subr.mxu0 %v64
  %365 = vmatpush1.msra.mxu0 %v63
  %366 = vmatprep.subr.mxu0 %v57
  %367 = vmatpush1.msra.mxu0 %v56
  %368 = vmatprep.subr.mxu0 %v50
  %369 = vmatpush1.msra.mxu0 %v49
  %370 = vmatprep.subr.mxu0 %v43
  %371 = vmatpush1.msra.mxu0 %v42
  %372 = vmatprep.subr.mxu0 %v36
  %373 = vmatpush1.msra.mxu0 %v35
  %374 = vmatprep.subr.mxu0 0.0
  %375 = vmatpush2.msra.mxu0 0.0
  %376 = vmatprep.subr.mxu0 0.0
  %377 = vmatpush2.msra.mxu0 0.0
  %378 = vmatprep.subr.mxu0 0.0
  %379 = vmatpush2.msra.mxu0 0.0
  %380 = vmatprep.subr.mxu0 0.0
  %381 = vmatpush2.msra.mxu0 0.0
  %382 = vmatprep.subr.mxu0 0.0
  %383 = vmatpush2.msra.mxu0 0.0
  %384 = vmatprep.subr.mxu0 0.0
  %385 = vmatpush2.msra.mxu0 0.0
  %386 = vmatprep.subr.mxu0 0.0
  %387 = vmatpush2.msra.mxu0 0.0
  %388 = vmatprep.subr.mxu0 0.0
  %389 = vmatpush2.msra.mxu0 0.0
  %390 = vmatprep.subr.mxu0 0.0
  %391 = vmatpush2.msra.mxu0 0.0
  %392 = vmatprep.subr.mxu0 0.0
  %393 = vmatpush2.msra.mxu0 0.0
  %394 = vmatprep.subr.mxu0 0.0
  %395 = vmatpush2.msra.mxu0 0.0
  %396 = vmatprep.subr.mxu0 0.0
  %397 = vmatpush2.msra.mxu0 0.0
  %398 = vmatprep.subr.mxu0 0.0
  %399 = vmatpush2.msra.mxu0 0.0
  %400 = vmatprep.subr.mxu0 0.0
  %401 = vmatpush2.msra.mxu0 0.0
  %402 = vmatprep.subr.mxu0 0.0
  %403 = vmatpush2.msra.mxu0 0.0
  %404 = vmatprep.subr.mxu0 0.0
  %405 = vmatpush2.msra.mxu0 0.0
  %406 = vmatprep.mubr.f32.mxu0 0.0
  %407 = vmatmul.mubr.f32.gmra.mxu0 %v138
  %v408 = vpop.f32.mrf.mxu0
  %v409 = vadd.f32 0.0, %v408
  %v410 = vpop.f32.mrf.mxu0
  %v411 = vadd.f32 0.0, %v410
  %412 = vmatprep.mubr.f32.mxu0 0.0
  %413 = vmatmul.mubr.f32.gmra.mxu0 %v141
  %v414 = vpop.f32.mrf.mxu0
  %v415 = vadd.f32 0.0, %v414
  %v416 = vpop.f32.mrf.mxu0
  %v417 = vadd.f32 0.0, %v416
  %418 = vmatprep.mubr.f32.mxu0 0.0
  %419 = vmatmul.mubr.f32.gmra.mxu0 %v144
  %v420 = vpop.f32.mrf.mxu0
  %v421 = vadd.f32 0.0, %v420
  %v422 = vpop.f32.mrf.mxu0
  %v423 = vadd.f32 0.0, %v422
  %424 = vmatprep.mubr.f32.mxu0 0.0
  %425 = vmatmul.mubr.f32.gmra.mxu0 %v147
  %v426 = vpop.f32.mrf.mxu0
  %v427 = vadd.f32 0.0, %v426
  %v428 = vpop.f32.mrf.mxu0
  %v429 = vadd.f32 0.0, %v428
  %430 = vmatprep.mubr.f32.mxu0 0.0
  %431 = vmatmul.mubr.f32.gmra.mxu0 %v150
  %v432 = vpop.f32.mrf.mxu0
  %v433 = vadd.f32 0.0, %v432
  %v434 = vpop.f32.mrf.mxu0
  %v435 = vadd.f32 0.0, %v434
  %436 = vdwg.mxu0
  %437 = vmatprep.subr.mxu0 0.0
  %438 = vmatpush1.msra.mxu0 0.0
  %439 = vmatprep.subr.mxu0 0.0
  %440 = vmatpush1.msra.mxu0 %v135
  %441 = vmatprep.subr.mxu0 0.0
  %442 = vmatpush1.msra.mxu0 %v128
  %443 = vmatprep.subr.mxu0 0.0
  %444 = vmatpush1.msra.mxu0 %v121
  %445 = vmatprep.subr.mxu0 0.0
  %446 = vmatpush1.msra.mxu0 %v114
  %447 = vmatprep.subr.mxu0 0.0
  %448 = vmatpush1.msra.mxu0 %v107
  %449 = vmatprep.subr.mxu0 0.0
  %450 = vmatpush1.msra.mxu0 %v100
  %451 = vmatprep.subr.mxu0 0.0
  %452 = vmatpush1.msra.mxu0 %v93
  %453 = vmatprep.subr.mxu0 0.0
  %454 = vmatpush1.msra.mxu0 %v86
  %455 = vmatprep.subr.mxu0 0.0
  %456 = vmatpush1.msra.mxu0 %v79
  %457 = vmatprep.subr.mxu0 0.0
  %458 = vmatpush1.msra.mxu0 %v72
  %459 = vmatprep.subr.mxu0 0.0
  %460 = vmatpush1.msra.mxu0 %v65
  %461 = vmatprep.subr.mxu0 0.0
  %462 = vmatpush1.msra.mxu0 %v58
  %463 = vmatprep.subr.mxu0 0.0
  %464 = vmatpush1.msra.mxu0 %v51
  %465 = vmatprep.subr.mxu0 0.0
  %466 = vmatpush1.msra.mxu0 %v44
  %467 = vmatprep.subr.mxu0 0.0
  %468 = vmatpush1.msra.mxu0 %v37
  %469 = vmatprep.subr.mxu0 0.0
  %470 = vmatpush2.msra.mxu0 0.0
  %471 = vmatprep.subr.mxu0 0.0
  %472 = vmatpush2.msra.mxu0 0.0
  %473 = vmatprep.subr.mxu0 0.0
  %474 = vmatpush2.msra.mxu0 0.0
  %475 = vmatprep.subr.mxu0 0.0
  %476 = vmatpush2.msra.mxu0 0.0
  %477 = vmatprep.subr.mxu0 0.0
  %478 = vmatpush2.msra.mxu0 0.0
  %479 = vmatprep.subr.mxu0 0.0
  %480 = vmatpush2.msra.mxu0 0.0
  %481 = vmatprep.subr.mxu0 0.0
  %482 = vmatpush2.msra.mxu0 0.0
  %483 = vmatprep.subr.mxu0 0.0
  %484 = vmatpush2.msra.mxu0 0.0
  %485 = vmatprep.subr.mxu0 0.0
  %486 = vmatpush2.msra.mxu0 0.0
  %487 = vmatprep.subr.mxu0 0.0
  %488 = vmatpush2.msra.mxu0 0.0
  %489 = vmatprep.subr.mxu0 0.0
  %490 = vmatpush2.msra.mxu0 0.0
  %491 = vmatprep.subr.mxu0 0.0
  %492 = vmatpush2.msra.mxu0 0.0
  %493 = vmatprep.subr.mxu0 0.0
  %494 = vmatpush2.msra.mxu0 0.0
  %495 = vmatprep.subr.mxu0 0.0
  %496 = vmatpush2.msra.mxu0 0.0
  %497 = vmatprep.subr.mxu0 0.0
  %498 = vmatpush2.msra.mxu0 0.0
  %499 = vmatprep.subr.mxu0 0.0
  %500 = vmatpush2.msra.mxu0 0.0
  %501 = vmatprep.mubr.f32.mxu0 0.0
  %502 = vmatmul.mubr.f32.gmra.mxu0 %v138
  %v503 = vpop.f32.mrf.mxu0
  %v504 = vadd.f32 0.0, %v503
  %v505 = vpop.f32.mrf.mxu0
  %506 = vmatprep.mubr.f32.mxu0 0.0
  %507 = vmatmul.mubr.f32.gmra.mxu0 %v141
  %v508 = vpop.f32.mrf.mxu0
  %v509 = vadd.f32 0.0, %v508
  %v510 = vpop.f32.mrf.mxu0
  %511 = vmatprep.mubr.f32.mxu0 0.0
  %512 = vmatmul.mubr.f32.gmra.mxu0 %v144
  %v513 = vpop.f32.mrf.mxu0
  %v514 = vadd.f32 0.0, %v513
  %v515 = vpop.f32.mrf.mxu0
  %516 = vmatprep.mubr.f32.mxu0 0.0
  %517 = vmatmul.mubr.f32.gmra.mxu0 %v147
  %v518 = vpop.f32.mrf.mxu0
  %v519 = vadd.f32 0.0, %v518
  %v520 = vpop.f32.mrf.mxu0
  %521 = vmatprep.mubr.f32.mxu0 0.0
  %522 = vmatmul.mubr.f32.gmra.mxu0 %v150
  %v523 = vpop.f32.mrf.mxu0
  %v524 = vadd.f32 0.0, %v523
  %v525 = vpop.f32.mrf.mxu0
  %526 = vdwg.mxu0
  %527 = vst [vmem:[%s3] sm:$0xff] %v219
  %528 = vst [vmem:[%s3 + $0x8] sm:$0xff] %v221
  %529 = vst [vmem:[%s3 + $0x10] sm:$0xff] %v314
  %530 = vst [vmem:[%s3 + $0x18] sm:$0xff] %v316
  %531 = vst [vmem:[%s3 + $0x20] sm:$0xff] %v409
  %532 = vst [vmem:[%s3 + $0x28] sm:$0xff] %v411
  %vm533 = vcmask 130048
  %534 = vst.msk [vmem:[%s3 + $0x30] sm:$0xff] %vm533, %v504
  %535 = vst [vmem:[%s3 + $0x38] sm:$0xff] %v225
  %536 = vst [vmem:[%s3 + $0x40] sm:$0xff] %v227
  %537 = vst [vmem:[%s3 + $0x48] sm:$0xff] %v320
  %538 = vst [vmem:[%s3 + $0x50] sm:$0xff] %v322
  %539 = vst [vmem:[%s3 + $0x58] sm:$0xff] %v415
  %540 = vst [vmem:[%s3 + $0x60] sm:$0xff] %v417
  %541 = vst.msk [vmem:[%s3 + $0x68] sm:$0xff] %vm533, %v509
  %542 = vst [vmem:[%s3 + $0x70] sm:$0xff] %v231
  %543 = vst [vmem:[%s3 + $0x78] sm:$0xff] %v233
  %544 = vst [vmem:[%s3 + $0x80] sm:$0xff] %v326
  %545 = vst [vmem:[%s3 + $0x88] sm:$0xff] %v328
  %546 = vst [vmem:[%s3 + $0x90] sm:$0xff] %v421
  %547 = vst [vmem:[%s3 + $0x98] sm:$0xff] %v423
  %548 = vst.msk [vmem:[%s3 + $0xa0] sm:$0xff] %vm533, %v514
  %549 = vst [vmem:[%s3 + $0xa8] sm:$0xff] %v237
  %550 = vst [vmem:[%s3 + $0xb0] sm:$0xff] %v239
  %551 = vst [vmem:[%s3 + $0xb8] sm:$0xff] %v332
  %552 = vst [vmem:[%s3 + $0xc0] sm:$0xff] %v334
  %553 = vst [vmem:[%s3 + $0xc8] sm:$0xff] %v427
  %554 = vst [vmem:[%s3 + $0xd0] sm:$0xff] %v429
  %555 = vst.msk [vmem:[%s3 + $0xd8] sm:$0xff] %vm533, %v519
  %556 = vst [vmem:[%s3 + $0xe0] sm:$0xff] %v243
  %557 = vst [vmem:[%s3 + $0xe8] sm:$0xff] %v245
  %558 = vst [vmem:[%s3 + $0xf0] sm:$0xff] %v338
  %559 = vst [vmem:[%s3 + $0xf8] sm:$0xff] %v340
  %560 = vst [vmem:[%s3 + $0x100] sm:$0xff] %v433
  %561 = vst [vmem:[%s3 + $0x108] sm:$0xff] %v435
  %562 = vst.msk [vmem:[%s3 + $0x110] sm:$0xff] %vm533, %v524
  // Predicated region
  $region14: #{mul_conv2d_1x1.1} parent=0 // pred_check
    _
  $region15: #{mul_conv2d_1x1.1} parent=0 // pred_check_branch
    %564 = sbr.rel (0) target = $region17
  $region16: #{mul_conv2d_1x1.1} parent=0 // pred_region
    _
  $region17: #{mul_conv2d_1x1.1} parent=0 // pred_fallthru
    _
  // Predicated region
  $region18: #{mul_conv2d_1x1.1} parent=0 // pred_check
    _
  $region19: #{mul_conv2d_1x1.1} parent=0 // pred_check_branch
    %566 = sbr.rel (0) target = $region21
  $region20: #{mul_conv2d_1x1.1} parent=0 // pred_region
    _
  $region21: #{mul_conv2d_1x1.1} parent=0 // pred_fallthru
    _

</llo_original>
